<compile_context>
chip_gen: v5e
topology: v5e:2x2
jax: 0.10.0
libtpu: 0.0.40
codegen_flags: <defaults>
</compile_context>

<pallas_src>
import functools

import numpy as np
import jax
import jax.numpy as jnp
from jax import lax
from jax.experimental import pallas as pl
from jax.experimental.pallas import tpu as pltpu

MODEL_DIM = 32                       # model_dim (torch default 256, shrunk for a small run)
NUM_HEADS = 4                        # num_heads (torch default 8)
DIM_PER_HEAD = MODEL_DIM // NUM_HEADS
HD = NUM_HEADS * MODEL_DIM           # stacked-head lane width (= 128 -> lane-dense slabs)
LN_EPS = 1e-5                        # nn.LayerNorm default eps
SUB_ROWS = 4                         # batch rows per inner iteration -> matmul LHS = 4*32 = 128


# ----------------------------- fused Pallas kernel -------------------------------------------

def _make_kernel(block_rows: int, sub_rows: int):
    dm, H, dph, hd = MODEL_DIM, NUM_HEADS, DIM_PER_HEAD, HD
    n_sub = block_rows // sub_rows
    f32 = jnp.float32

    def kernel(q_ref, ke_ref, ve_ref, lsel_ref, rsel_ref, gs_ref, w2t_ref,
               msel_ref, asel_ref, gamma_ref, beta_ref, o_ref):
        # One grid step owns `block_rows` batch rows; an inner loop walks sub-batches of
        # `sub_rows` rows so only one (sub*32, 128) score slab is live at a time (vreg budget).
        def body(sb, carry):
            r0 = pl.multiple_of(sb * sub_rows, sub_rows)
            qr = q_ref[pl.ds(r0, sub_rows), :]        # (R, dm)  raw query rows (also residual)
            ker = ke_ref[pl.ds(r0, sub_rows), :]      # (R, hd)  K[b, (l//dm)*dph + (l%dm)//H]
            ver = ve_ref[pl.ds(r0, sub_rows), :]      # (R, hd)  V[b, (l//dm)*dph + (l%dm)//H]

            # Stacked-head query matrix: qmat[r, m, h*dm + n] = Q[r, h*dph + m//H]
            # built as (Lsel * q_row) @ Rsel -> one fat (R*dm, dm) @ (dm, hd) MXU op.
            lq = lsel_ref[...][None] * qr[:, None, :]                       # (R, dm, dm)
            qmat = jnp.dot(lq.reshape(sub_rows * dm, dm), rsel_ref[...],
                           preferred_element_type=f32)
            qmat = qmat.reshape(sub_rows, dm, hd)

            # Scores with the softmax scale and G = wq_r @ wk_r^T folded into gs (constant).
            s = qmat * ker[:, None, :] * gs_ref[...][None]                  # (R, dm, hd)

            # torch Softmax(dim=2): softmax over the *query* axis m -> sublane reduction.
            mx = jnp.max(s, axis=1, keepdims=True)                          # (R, 1, hd)
            e = jnp.exp(s - mx)                                             # (R, dm, hd)
            den = jnp.sum(e, axis=1, keepdims=True)                         # (R, 1, hd)
            # EUP reciprocal, folded into the small value row (not the full score slab).
            w = ver[:, None, :] * pl.reciprocal(den, approx=True)           # (R, 1, hd)

            # W2 = wf_r @ wv_r^T folds linear_final into the P@V contraction.
            t = e * w * w2t_ref[...][None]                                  # (R, dm, hd)

            # Per-head lane group-sum + scatter to output features: one (R*dm, hd)@(hd, dm)
            # matmul, then a masked sublane reduction over m.
            tm = jnp.dot(t.reshape(sub_rows * dm, hd), msel_ref[...],
                         preferred_element_type=f32)
            tm = tm.reshape(sub_rows, dm, dm)
            proj = jnp.sum(tm * asel_ref[...][None], axis=1)                # (R, dm)

            # Residual + LayerNorm (per row, lane reductions).
            x = qr + proj
            mu = jnp.mean(x, axis=1, keepdims=True)
            var = jnp.mean(jnp.square(x - mu), axis=1, keepdims=True)
            y = (x - mu) * lax.rsqrt(var + LN_EPS)
            o_ref[pl.ds(r0, sub_rows), :] = y * gamma_ref[...] + beta_ref[...]
            return carry

        lax.fori_loop(0, n_sub, body, 0)

    return kernel


# ----------------------------- host-side constants --------------------------------------------

@functools.lru_cache(maxsize=None)
def _selection_constants():
    dm, H, dph, hd = MODEL_DIM, NUM_HEADS, DIM_PER_HEAD, HD
    m = np.arange(dm)
    i = np.arange(dm)
    l = np.arange(hd)
    # (Lsel * q_row) @ Rsel  ==  qmat[m, l] = Q[(l//dm)*dph + m//H]
    lsel = (i[None, :] % dph == m[:, None] // H).astype(np.float32)    # (dm, dm)
    rsel = (i[:, None] // dph == l[None, :] // dm).astype(np.float32)  # (dm, hd)
    # T @ Msel sums each head's 32-lane block;  Asel masks the group-sum over m.
    msel = (l[:, None] // dm == i[None, :] // dph).astype(np.float32)  # (hd, dm)
    asel = (m[:, None] // H == i[None, :] % dph).astype(np.float32)    # (dm, dm)
    # Strided expansion index for key/value: idx[h*dm + n] = h*dph + n//H
    gidx = ((l // dm) * dph + (l % dm) // H).astype(np.int32)          # (hd,)
    return lsel, rsel, msel, asel, gidx


def _pick_block_rows(batch: int, sub_rows: int) -> int:
    # Keep >= 2 grid steps when the batch allows (v7x has 2 TensorCores and the "parallel"
    # batch-block axis is how this kernel shards across them); cap at 128 rows; keep the
    # block a multiple of the sub-batch and of the 8-sublane tile.
    quantum = max(sub_rows, 8)
    target = min(128, max(quantum, -(-batch // 2)))
    return -(-target // quantum) * quantum


# ----------------------------- wrapper ---------------------------------------------------------

def multi_head_attention(query, key, value, params, *, block_rows=None, sub_rows=SUB_ROWS):
    f32 = jnp.float32
    B, dm = query.shape
    assert dm == MODEL_DIM
    H, dph, hd = NUM_HEADS, DIM_PER_HEAD, HD

    # scale = (key.size(-1) // num_heads) ** (-0.5) -- integer division exactly as in the module.
    # Guard against configs where the module's integer division would be 0 (reviewer concern).
    assert dph // H > 0, "model_dim / num_heads**2 must be >= 1 for the module's integer scale"
    scale = float((dph // H) ** (-0.5))

    wq_r = params["wq"].astype(f32).reshape(H, dph)
    wk_r = params["wk"].astype(f32).reshape(H, dph)
    wv_r = params["wv"].astype(f32).reshape(H, dph)
    wf_r = params["wf"].astype(f32).reshape(H, dph)

    # G folds wq/wk into an HxH Gram matrix; W2 folds linear_final (wf) into wv.
    g = jnp.dot(wq_r, wk_r.T, precision=lax.Precision.HIGHEST)        # (H, H)
    w2 = jnp.dot(wf_r, wv_r.T, precision=lax.Precision.HIGHEST)       # (H, H)
    gs = scale * jnp.tile(g, (dph, dm))    # (dm, hd): gs[m, h*dm+n]  = scale*G[m%H, n%H]
    w2t = jnp.tile(w2, (dph, dm))          # (dm, hd): w2t[m, h*dm+n] = W2[m%H, n%H]

    lsel_np, rsel_np, msel_np, asel_np, gidx = _selection_constants()
    lsel = jnp.asarray(lsel_np)
    rsel = jnp.asarray(rsel_np)
    msel = jnp.asarray(msel_np)
    asel = jnp.asarray(asel_np)

    gamma = params["gamma"].astype(f32).reshape(1, dm)
    beta = params["beta"].astype(f32).reshape(1, dm)

    if block_rows is None:
        block_rows = _pick_block_rows(B, sub_rows)
    assert block_rows % sub_rows == 0

    # Pad the batch to a whole number of blocks (padded rows compute harmless values).
    bp = -(-B // block_rows) * block_rows
    pad = bp - B
    q = query.astype(f32)
    k = key.astype(f32)
    v = value.astype(f32)
    if pad:
        zeros = jnp.zeros((pad, dm), f32)
        q = jnp.concatenate([q, zeros], axis=0)
        k = jnp.concatenate([k, zeros], axis=0)
        v = jnp.concatenate([v, zeros], axis=0)

    # Hoisted strided "gathers": cheap XLA gathers producing lane-dense (Bp, 128) inputs
    # (replaces the old in-kernel estack/fstack selection matmuls).
    ke = k[:, gidx]
    ve = v[:, gidx]

    nb = bp // block_rows
    row_q = pl.BlockSpec((block_rows, dm), lambda b: (b, 0))
    row_e = pl.BlockSpec((block_rows, hd), lambda b: (b, 0))

    def const_spec(arr):
        return pl.BlockSpec(arr.shape, lambda b: (0, 0))

    out = pl.pallas_call(
        _make_kernel(block_rows, sub_rows),
        grid=(nb,),
        in_specs=[row_q, row_e, row_e,
                  const_spec(lsel), const_spec(rsel), const_spec(gs), const_spec(w2t),
                  const_spec(msel), const_spec(asel), const_spec(gamma), const_spec(beta)],
        out_specs=pl.BlockSpec((block_rows, dm), lambda b: (b, 0)),
        out_shape=jax.ShapeDtypeStruct((bp, dm), f32),
        compiler_params=pltpu.CompilerParams(dimension_semantics=("parallel",)),
    )(q, ke, ve, lsel, rsel, gs, w2t, msel, asel, gamma, beta)

    return out[:B]


# ----------------------------- pure-JAX reference (for verification) -------------------------

def reference(query, key, value, params):
    B, dm = query.shape
    H, dph = NUM_HEADS, DIM_PER_HEAD
    qp = query[..., None] * params["wq"][None, None, :]
    kp = key[..., None] * params["wk"][None, None, :]
    vp = value[..., None] * params["wv"][None, None, :]
    qh = qp.reshape(B, H, dm, dph)
    kh = kp.reshape(B, H, dm, dph)
    vh = vp.reshape(B, H, dm, dph)
    scale = (dph // H) ** (-0.5)
    s = jnp.einsum("bhmd,bhnd->bhmn", qh, kh) * scale
    att = jax.nn.softmax(s, axis=2)                    # torch Softmax(dim=2): over query axis
    o = jnp.einsum("bhmn,bhnd->bhmd", att, vh).reshape(B, dm, dm)
    proj = jnp.einsum("bmk,k->bm", o, params["wf"])
    x = query + proj
    mean = x.mean(-1, keepdims=True)
    var = ((x - mean) ** 2).mean(-1, keepdims=True)
    return (x - mean) / jnp.sqrt(var + LN_EPS) * params["gamma"] + params["beta"]


# ----------------------------- main -----------------------------------------------------------

if __name__ == "__main__":
    B = 128    # small, but large enough to exercise batch blocking with 2 parallel grid steps
    root = jax.random.PRNGKey(0)
    kq, kk, kv, kf, kx1, kx2, kx3 = jax.random.split(root, 7)

    params = {
        # nn.Linear(1, model_dim, bias=False) -> weight (model_dim, 1), stored flat.
        "wq": jax.random.uniform(kq, (MODEL_DIM,), jnp.float32, -1.0, 1.0),
        "wk": jax.random.uniform(kk, (MODEL_DIM,), jnp.float32, -1.0, 1.0),
        "wv": jax.random.uniform(kv, (MODEL_DIM,), jnp.float32, -1.0, 1.0),
        # nn.Linear(model_dim, 1, bias=False) -> weight (1, model_dim), stored flat.
        "wf": jax.random.uniform(kf, (MODEL_DIM,), jnp.float32,
                                 -1.0 / np.sqrt(MODEL_DIM), 1.0 / np.sqrt(MODEL_DIM)),
        # nn.LayerNorm(model_dim)
        "gamma": jnp.ones((MODEL_DIM,), jnp.float32),
        "beta": jnp.zeros((MODEL_DIM,), jnp.float32),
    }

    query = jax.random.normal(kx1, (B, MODEL_DIM), jnp.float32)
    key = jax.random.normal(kx2, (B, MODEL_DIM), jnp.float32)
    value = jax.random.normal(kx3, (B, MODEL_DIM), jnp.float32)

    mha = jax.jit(multi_head_attention)
    out = jax.block_until_ready(mha(query, key, value, params))

    ref = jax.block_until_ready(reference(query, key, value, params))
    # Tolerance covers the approximate EUP reciprocal used for the softmax normalization
    # (the exact-division variant of this kernel agrees with the reference to ~1e-5).
    np.testing.assert_allclose(np.asarray(out), np.asarray(ref), atol=5e-3, rtol=5e-3)

    print("KERNEL_OK")
</pallas_src>

<mosaic_0001>
module attributes {stable_mosaic.version = 11 : i64} {
  func.func @kernel(%arg0: i32, %arg1: memref<64x32xf32, #tpu.memory_space<vmem>>, %arg2: memref<64x128xf32, #tpu.memory_space<vmem>>, %arg3: memref<64x128xf32, #tpu.memory_space<vmem>>, %arg4: memref<32x32xf32, #tpu.memory_space<vmem>>, %arg5: memref<32x128xf32, #tpu.memory_space<vmem>>, %arg6: memref<32x128xf32, #tpu.memory_space<vmem>>, %arg7: memref<32x128xf32, #tpu.memory_space<vmem>>, %arg8: memref<128x32xf32, #tpu.memory_space<vmem>>, %arg9: memref<32x32xf32, #tpu.memory_space<vmem>>, %arg10: memref<1x32xf32, #tpu.memory_space<vmem>>, %arg11: memref<1x32xf32, #tpu.memory_space<vmem>>, %arg12: memref<64x32xf32, #tpu.memory_space<vmem>>) attributes {dimension_semantics = [#tpu.dimension_semantics<parallel>], iteration_bounds = array<i64: 2>, scalar_prefetch = 0 : i64, scratch_operands = 0 : i64, tpu.core_type = #tpu.core_type<tc>, window_params = [{transform_indices = @transform_0, window_bounds = array<i64: 64, 32>}, {transform_indices = @transform_1, window_bounds = array<i64: 64, 128>}, {transform_indices = @transform_2, window_bounds = array<i64: 64, 128>}, {pipeline_mode = #tpu.pipeline_mode<synchronous>, transform_indices = @transform_3, window_bounds = array<i64: 32, 32>}, {pipeline_mode = #tpu.pipeline_mode<synchronous>, transform_indices = @transform_4, window_bounds = array<i64: 32, 128>}, {pipeline_mode = #tpu.pipeline_mode<synchronous>, transform_indices = @transform_5, window_bounds = array<i64: 32, 128>}, {pipeline_mode = #tpu.pipeline_mode<synchronous>, transform_indices = @transform_6, window_bounds = array<i64: 32, 128>}, {pipeline_mode = #tpu.pipeline_mode<synchronous>, transform_indices = @transform_7, window_bounds = array<i64: 128, 32>}, {pipeline_mode = #tpu.pipeline_mode<synchronous>, transform_indices = @transform_8, window_bounds = array<i64: 32, 32>}, {pipeline_mode = #tpu.pipeline_mode<synchronous>, transform_indices = @transform_9, window_bounds = array<i64: 1, 32>}, {pipeline_mode = #tpu.pipeline_mode<synchronous>, transform_indices = @transform_10, window_bounds = array<i64: 1, 32>}, {transform_indices = @transform_11, window_bounds = array<i64: 64, 32>}]} {
    %c0_i32 = arith.constant 0 : i32
    %c16_i32 = arith.constant 16 : i32
    %0 = arith.addi %c0_i32, %c16_i32 : i32
    %c1_i32 = arith.constant 1 : i32
    scf.for %arg13 = %c0_i32 to %0 step %c1_i32  : i32 {
      %c4_i32 = arith.constant 4 : i32
      %1 = arith.muli %arg13, %c4_i32 : i32
      %2 = tpu.assume_multiple %1, 4 : i32
      %3 = arith.index_cast %2 : i32 to index
      %c0 = arith.constant 0 : index
      %4 = vector.load %arg1[%3, %c0] : memref<64x32xf32, #tpu.memory_space<vmem>>, vector<4x32xf32>
      %5 = arith.index_cast %2 : i32 to index
      %c0_1 = arith.constant 0 : index
      %6 = vector.load %arg2[%5, %c0_1] : memref<64x128xf32, #tpu.memory_space<vmem>>, vector<4x128xf32>
      %7 = arith.index_cast %2 : i32 to index
      %c0_2 = arith.constant 0 : index
      %8 = vector.load %arg3[%7, %c0_2] : memref<64x128xf32, #tpu.memory_space<vmem>>, vector<4x128xf32>
      %c0_3 = arith.constant 0 : index
      %c0_4 = arith.constant 0 : index
      %9 = vector.load %arg4[%c0_3, %c0_4] : memref<32x32xf32, #tpu.memory_space<vmem>>, vector<32x32xf32>
      %10 = vector.shape_cast %9 : vector<32x32xf32> to vector<1x32x32xf32>
      %11 = vector.shape_cast %4 : vector<4x32xf32> to vector<4x1x32xf32>
      %12 = vector.broadcast %10 : vector<1x32x32xf32> to vector<4x32x32xf32>
      %13 = vector.broadcast %11 : vector<4x1x32xf32> to vector<4x32x32xf32>
      %14 = arith.mulf %12, %13 : vector<4x32x32xf32>
      %15 = vector.shape_cast %14 : vector<4x32x32xf32> to vector<128x32xf32>
      %c0_5 = arith.constant 0 : index
      %c0_6 = arith.constant 0 : index
      %16 = vector.load %arg5[%c0_5, %c0_6] : memref<32x128xf32, #tpu.memory_space<vmem>>, vector<32x128xf32>
      %cst = arith.constant dense<0.000000e+00> : vector<128x128xf32>
      %17 = tpu.matmul %15, %16, %cst {dimension_numbers = #tpu.dot_dimension_numbers<[1], [0], [0], [1], [0, 0, 1, 1], [], []>} : vector<128x32xf32>, vector<32x128xf32>, vector<128x128xf32> -> vector<128x128xf32>
      %18 = vector.shape_cast %17 : vector<128x128xf32> to vector<4x32x128xf32>
      %19 = vector.shape_cast %6 : vector<4x128xf32> to vector<4x1x128xf32>
      %20 = vector.broadcast %19 : vector<4x1x128xf32> to vector<4x32x128xf32>
      %21 = arith.mulf %18, %20 : vector<4x32x128xf32>
      %c0_7 = arith.constant 0 : index
      %c0_8 = arith.constant 0 : index
      %22 = vector.load %arg6[%c0_7, %c0_8] : memref<32x128xf32, #tpu.memory_space<vmem>>, vector<32x128xf32>
      %23 = vector.shape_cast %22 : vector<32x128xf32> to vector<1x32x128xf32>
      %24 = vector.broadcast %23 : vector<1x32x128xf32> to vector<4x32x128xf32>
      %25 = arith.mulf %21, %24 : vector<4x32x128xf32>
      %cst_9 = arith.constant dense<0xFF800000> : vector<4x128xf32>
      %26 = vector.multi_reduction <maximumf>, %25, %cst_9 [1] : vector<4x32x128xf32> to vector<4x128xf32>
      %27 = vector.shape_cast %26 : vector<4x128xf32> to vector<4x1x128xf32>
      %28 = vector.broadcast %27 : vector<4x1x128xf32> to vector<4x32x128xf32>
      %29 = arith.subf %25, %28 : vector<4x32x128xf32>
      %30 = math.exp %29 : vector<4x32x128xf32>
      %cst_10 = arith.constant dense<0.000000e+00> : vector<4x128xf32>
      %31 = vector.multi_reduction <add>, %30, %cst_10 [1] : vector<4x32x128xf32> to vector<4x128xf32>
      %32 = vector.shape_cast %31 : vector<4x128xf32> to vector<4x1x128xf32>
      %33 = vector.shape_cast %8 : vector<4x128xf32> to vector<4x1x128xf32>
      %34 = tpu.reciprocal %32 {approx = true} : vector<4x1x128xf32> -> vector<4x1x128xf32>
      %35 = arith.mulf %33, %34 : vector<4x1x128xf32>
      %36 = vector.broadcast %35 : vector<4x1x128xf32> to vector<4x32x128xf32>
      %37 = arith.mulf %30, %36 : vector<4x32x128xf32>
      %c0_11 = arith.constant 0 : index
      %c0_12 = arith.constant 0 : index
      %38 = vector.load %arg7[%c0_11, %c0_12] : memref<32x128xf32, #tpu.memory_space<vmem>>, vector<32x128xf32>
      %39 = vector.shape_cast %38 : vector<32x128xf32> to vector<1x32x128xf32>
      %40 = vector.broadcast %39 : vector<1x32x128xf32> to vector<4x32x128xf32>
      %41 = arith.mulf %37, %40 : vector<4x32x128xf32>
      %42 = vector.shape_cast %41 : vector<4x32x128xf32> to vector<128x128xf32>
      %c0_13 = arith.constant 0 : index
      %c0_14 = arith.constant 0 : index
      %43 = vector.load %arg8[%c0_13, %c0_14] : memref<128x32xf32, #tpu.memory_space<vmem>>, vector<128x32xf32>
      %cst_15 = arith.constant dense<0.000000e+00> : vector<128x32xf32>
      %44 = tpu.matmul %42, %43, %cst_15 {dimension_numbers = #tpu.dot_dimension_numbers<[1], [0], [0], [1], [0, 0, 1, 1], [], []>} : vector<128x128xf32>, vector<128x32xf32>, vector<128x32xf32> -> vector<128x32xf32>
      %45 = vector.shape_cast %44 : vector<128x32xf32> to vector<4x32x32xf32>
      %c0_16 = arith.constant 0 : index
      %c0_17 = arith.constant 0 : index
      %46 = vector.load %arg9[%c0_16, %c0_17] : memref<32x32xf32, #tpu.memory_space<vmem>>, vector<32x32xf32>
      %47 = vector.shape_cast %46 : vector<32x32xf32> to vector<1x32x32xf32>
      %48 = vector.broadcast %47 : vector<1x32x32xf32> to vector<4x32x32xf32>
      %49 = arith.mulf %45, %48 : vector<4x32x32xf32>
      %cst_18 = arith.constant dense<0.000000e+00> : vector<4x32xf32>
      %50 = vector.multi_reduction <add>, %49, %cst_18 [1] : vector<4x32x32xf32> to vector<4x32xf32>
      %51 = arith.addf %4, %50 : vector<4x32xf32>
      %cst_19 = arith.constant dense<0.000000e+00> : vector<4xf32>
      %52 = vector.multi_reduction <add>, %51, %cst_19 [1] : vector<4x32xf32> to vector<4xf32>
      %53 = vector.shape_cast %52 : vector<4xf32> to vector<4x1xf32>
      %cst_20 = arith.constant 3.200000e+01 : f32
      %54 = vector.broadcast %cst_20 : f32 to vector<4x1xf32>
      %55 = arith.divf %53, %54 : vector<4x1xf32>
      %56 = vector.broadcast %55 : vector<4x1xf32> to vector<4x32xf32>
      %57 = arith.subf %51, %56 : vector<4x32xf32>
      %58 = arith.mulf %57, %57 : vector<4x32xf32>
      %cst_21 = arith.constant dense<0.000000e+00> : vector<4xf32>
      %59 = vector.multi_reduction <add>, %58, %cst_21 [1] : vector<4x32xf32> to vector<4xf32>
      %60 = vector.shape_cast %59 : vector<4xf32> to vector<4x1xf32>
      %cst_22 = arith.constant 3.200000e+01 : f32
      %61 = vector.broadcast %cst_22 : f32 to vector<4x1xf32>
      %62 = arith.divf %60, %61 : vector<4x1xf32>
      %63 = vector.broadcast %55 : vector<4x1xf32> to vector<4x32xf32>
      %64 = arith.subf %51, %63 : vector<4x32xf32>
      %cst_23 = arith.constant 9.99999974E-6 : f32
      %65 = vector.broadcast %cst_23 : f32 to vector<4x1xf32>
      %66 = arith.addf %62, %65 : vector<4x1xf32>
      %67 = math.rsqrt %66 : vector<4x1xf32>
      %68 = vector.broadcast %67 : vector<4x1xf32> to vector<4x32xf32>
      %69 = arith.mulf %64, %68 : vector<4x32xf32>
      %c0_24 = arith.constant 0 : index
      %c0_25 = arith.constant 0 : index
      %70 = vector.load %arg10[%c0_24, %c0_25] : memref<1x32xf32, #tpu.memory_space<vmem>>, vector<1x32xf32>
      %71 = vector.broadcast %70 : vector<1x32xf32> to vector<4x32xf32>
      %72 = arith.mulf %69, %71 : vector<4x32xf32>
      %c0_26 = arith.constant 0 : index
      %c0_27 = arith.constant 0 : index
      %73 = vector.load %arg11[%c0_26, %c0_27] : memref<1x32xf32, #tpu.memory_space<vmem>>, vector<1x32xf32>
      %74 = vector.broadcast %73 : vector<1x32xf32> to vector<4x32xf32>
      %75 = arith.addf %72, %74 : vector<4x32xf32>
      %76 = arith.index_cast %2 : i32 to index
      %c0_28 = arith.constant 0 : index
      %77 = vector.load %arg12[%76, %c0_28] : memref<64x32xf32, #tpu.memory_space<vmem>>, vector<4x32xf32>
      tpu.vector_store %arg12[%76, %c0_28], %75 {strides = array<i32>} : memref<64x32xf32, #tpu.memory_space<vmem>>, vector<4x32xf32>,
    }
    %c16_i32_0 = arith.constant 16 : i32
    return
  }
  func.func @transform_0(%arg0: i32) -> (i32, i32) {
    %c0_i32 = arith.constant 0 : i32
    %c0_i32_0 = arith.constant 0 : i32
    return %arg0, %c0_i32 : i32, i32
  }
  func.func @transform_1(%arg0: i32) -> (i32, i32) {
    %c0_i32 = arith.constant 0 : i32
    %c0_i32_0 = arith.constant 0 : i32
    return %arg0, %c0_i32 : i32, i32
  }
  func.func @transform_2(%arg0: i32) -> (i32, i32) {
    %c0_i32 = arith.constant 0 : i32
    %c0_i32_0 = arith.constant 0 : i32
    return %arg0, %c0_i32 : i32, i32
  }
  func.func @transform_3(%arg0: i32) -> (i32, i32) {
    %c0_i32 = arith.constant 0 : i32
    %c0_i32_0 = arith.constant 0 : i32
    %c0_i32_1 = arith.constant 0 : i32
    return %c0_i32, %c0_i32_0 : i32, i32
  }
  func.func @transform_4(%arg0: i32) -> (i32, i32) {
    %c0_i32 = arith.constant 0 : i32
    %c0_i32_0 = arith.constant 0 : i32
    %c0_i32_1 = arith.constant 0 : i32
    return %c0_i32, %c0_i32_0 : i32, i32
  }
  func.func @transform_5(%arg0: i32) -> (i32, i32) {
    %c0_i32 = arith.constant 0 : i32
    %c0_i32_0 = arith.constant 0 : i32
    %c0_i32_1 = arith.constant 0 : i32
    return %c0_i32, %c0_i32_0 : i32, i32
  }
  func.func @transform_6(%arg0: i32) -> (i32, i32) {
    %c0_i32 = arith.constant 0 : i32
    %c0_i32_0 = arith.constant 0 : i32
    %c0_i32_1 = arith.constant 0 : i32
    return %c0_i32, %c0_i32_0 : i32, i32
  }
  func.func @transform_7(%arg0: i32) -> (i32, i32) {
    %c0_i32 = arith.constant 0 : i32
    %c0_i32_0 = arith.constant 0 : i32
    %c0_i32_1 = arith.constant 0 : i32
    return %c0_i32, %c0_i32_0 : i32, i32
  }
  func.func @transform_8(%arg0: i32) -> (i32, i32) {
    %c0_i32 = arith.constant 0 : i32
    %c0_i32_0 = arith.constant 0 : i32
    %c0_i32_1 = arith.constant 0 : i32
    return %c0_i32, %c0_i32_0 : i32, i32
  }
  func.func @transform_9(%arg0: i32) -> (i32, i32) {
    %c0_i32 = arith.constant 0 : i32
    %c0_i32_0 = arith.constant 0 : i32
    %c0_i32_1 = arith.constant 0 : i32
    return %c0_i32, %c0_i32_0 : i32, i32
  }
  func.func @transform_10(%arg0: i32) -> (i32, i32) {
    %c0_i32 = arith.constant 0 : i32
    %c0_i32_0 = arith.constant 0 : i32
    %c0_i32_1 = arith.constant 0 : i32
    return %c0_i32, %c0_i32_0 : i32, i32
  }
  func.func @transform_11(%arg0: i32) -> (i32, i32) {
    %c0_i32 = arith.constant 0 : i32
    %c0_i32_0 = arith.constant 0 : i32
    return %arg0, %c0_i32 : i32, i32
  }
}

</mosaic_0001>

<llo_original>
// kernel: multi_head_attention.1
$region0: #{multi_head_attention.1}
  #allocation0 [shape = 'u32[]', space=smem, size = 0x4, offset = 0x4, fixed_abs, tag = 'smem constant byte address 0x4 - core index']
  #allocation1 [shape = 'u32[72,128]{1,0:T(1,128)}', space=vmem, size = 0x9000, scoped, tag = 'internal scratch']
  %s0 = inlined_call_operand.vmem [shape: f32[128,32], index: 0, kind: input, shape index: {}]
  %s1 = inlined_call_operand.vmem [shape: f32[128,128], index: 1, kind: input, shape index: {}]
  %s2 = inlined_call_operand.vmem [shape: f32[128,128], index: 2, kind: input, shape index: {}]
  %s3 = inlined_call_operand.vmem [shape: f32[32,32], index: 3, kind: input, shape index: {}, may-alias: {3,8}]
  %s4 = inlined_call_operand.vmem [shape: f32[32,128], index: 4, kind: input, shape index: {}]
  %s5 = inlined_call_operand.vmem [shape: f32[32,128], index: 5, kind: input, shape index: {}]
  %s6 = inlined_call_operand.vmem [shape: f32[32,128], index: 6, kind: input, shape index: {}]
  %s7 = inlined_call_operand.vmem [shape: f32[128,32], index: 7, kind: input, shape index: {}]
  %s8 = inlined_call_operand.vmem [shape: f32[32,32], index: 8, kind: input, shape index: {}, may-alias: {3,8}]
  %s9 = inlined_call_operand.vmem [shape: f32[1,32], index: 9, kind: input, shape index: {}]
  %s10 = inlined_call_operand.vmem [shape: f32[1,32], index: 10, kind: input, shape index: {}]
  %s11 = inlined_call_operand.vmem [shape: f32[128,32], index: 11, kind: output, shape index: {}]
  %s12 = sld [smem:[#allocation0]]
  $region84: #{multi_head_attention.1} parent=0
    _
  %s14 = ssub.s32 1, %s12
  %s15 = scalar_select 0, %s14, %s12
  loop: start=0, step=1, limit=4
  $region2: #{multi_head_attention.1} parent=0 // loop_pre_header
    _
  $region3: #{multi_head_attention.1} parent=0 // loop_header
    %s17 = sphi 0, %s21
    %p18 = scmp.ge.s32.totalorder %s17, 4
    %s27 = sphi 0, %s29
    %s30 = sphi 0, %s27
    %s31 = sphi 0, %s30
    %s47 = sphi 0, %s31
    %s53 = sphi 0, %s55
    %s56 = sphi 0, %s53
    %s57 = sphi 0, %s56
    %s73 = sphi 0, %s57
    %s79 = sphi 0, %s81
    %s82 = sphi 0, %s79
    %s83 = sphi 0, %s82
    %s99 = sphi 0, %s83
    %s103 = sphi 0, %s103
    %s105 = sphi 0, %s103
    %s106 = sphi 0, %s105
    %s120 = sphi 0, %s106
    %s124 = sphi 0, %s124
    %s126 = sphi 0, %s124
    %s127 = sphi 0, %s126
    %s141 = sphi 0, %s127
    %s145 = sphi 0, %s145
    %s147 = sphi 0, %s145
    %s148 = sphi 0, %s147
    %s162 = sphi 0, %s148
    %s166 = sphi 0, %s166
    %s168 = sphi 0, %s166
    %s169 = sphi 0, %s168
    %s183 = sphi 0, %s169
    %s187 = sphi 0, %s187
    %s189 = sphi 0, %s187
    %s190 = sphi 0, %s189
    %s204 = sphi 0, %s190
    %s208 = sphi 0, %s208
    %s210 = sphi 0, %s208
    %s211 = sphi 0, %s210
    %s225 = sphi 0, %s211
    %s229 = sphi 0, %s229
    %s231 = sphi 0, %s229
    %s232 = sphi 0, %s231
    %s246 = sphi 0, %s232
    %s250 = sphi 0, %s250
    %s252 = sphi 0, %s250
    %s253 = sphi 0, %s252
    %s267 = sphi 0, %s253
    %s273 = sphi 0, %s275
    %s276 = sphi 0, %s273
    %s277 = sphi 0, %s276
    %s293 = sphi 0, %s277
  $region4: #{multi_head_attention.1} parent=0 // loop_header_branch
    %20 = sbr.rel (%p18) target = $region8
  $region5: #{multi_head_attention.1} parent=0 // loop_body
    %s22 = ssub.s32 %s17, 1
    %s23 = ssub.s32 %s17, 2
    %s24 = sadd.s32 %s17, 1
    %s25 = ssub.s32 %s17, %s24
    %p26 = scmp.eq.s32.totalorder %s25, 0
    %s28 = sadd.s32 %s27, 1
    %s29 = scalar_select %p26, %s27, %s28
    %p32 = pneg %p26
    %p33 = scmp.eq.s32.totalorder %s17, 1
    %p34 = por %p32, %p33
    %p35 = scmp.ne.s32.totalorder %s27, %s30
    %p36 = scmp.eq.s32.totalorder %s17, 0
    %p37 = por %p35, %p36
    %p38 = scmp.ne.s32.totalorder %s27, %s30
    %p39 = scmp.eq.s32.totalorder %s22, 1
    %p40 = por %p38, %p39
    %p41 = scmp.ne.s32.totalorder %s30, %s31
    %p42 = scmp.eq.s32.totalorder %s22, 0
    %p43 = por %p41, %p42
    %p44 = scmp.ne.s32.totalorder %s30, %s31
    %p45 = scmp.eq.s32.totalorder %s23, 1
    %p46 = por %p44, %p45
    %p48 = scmp.ne.s32.totalorder %s31, %s47
    %p49 = scmp.eq.s32.totalorder %s23, 0
    %p50 = por %p48, %p49
    %s51 = ssub.s32 %s17, %s24
    %p52 = scmp.eq.s32.totalorder %s51, 0
    %s54 = sadd.s32 %s53, 1
    %s55 = scalar_select %p52, %s53, %s54
    %p58 = pneg %p52
    %p59 = scmp.eq.s32.totalorder %s17, 1
    %p60 = por %p58, %p59
    %p61 = scmp.ne.s32.totalorder %s53, %s56
    %p62 = scmp.eq.s32.totalorder %s17, 0
    %p63 = por %p61, %p62
    %p64 = scmp.ne.s32.totalorder %s53, %s56
    %p65 = scmp.eq.s32.totalorder %s22, 1
    %p66 = por %p64, %p65
    %p67 = scmp.ne.s32.totalorder %s56, %s57
    %p68 = scmp.eq.s32.totalorder %s22, 0
    %p69 = por %p67, %p68
    %p70 = scmp.ne.s32.totalorder %s56, %s57
    %p71 = scmp.eq.s32.totalorder %s23, 1
    %p72 = por %p70, %p71
    %p74 = scmp.ne.s32.totalorder %s57, %s73
    %p75 = scmp.eq.s32.totalorder %s23, 0
    %p76 = por %p74, %p75
    %s77 = ssub.s32 %s17, %s24
    %p78 = scmp.eq.s32.totalorder %s77, 0
    %s80 = sadd.s32 %s79, 1
    %s81 = scalar_select %p78, %s79, %s80
    %p84 = pneg %p78
    %p85 = scmp.eq.s32.totalorder %s17, 1
    %p86 = por %p84, %p85
    %p87 = scmp.ne.s32.totalorder %s79, %s82
    %p88 = scmp.eq.s32.totalorder %s17, 0
    %p89 = por %p87, %p88
    %p90 = scmp.ne.s32.totalorder %s79, %s82
    %p91 = scmp.eq.s32.totalorder %s22, 1
    %p92 = por %p90, %p91
    %p93 = scmp.ne.s32.totalorder %s82, %s83
    %p94 = scmp.eq.s32.totalorder %s22, 0
    %p95 = por %p93, %p94
    %p96 = scmp.ne.s32.totalorder %s82, %s83
    %p97 = scmp.eq.s32.totalorder %s23, 1
    %p98 = por %p96, %p97
    %p100 = scmp.ne.s32.totalorder %s83, %s99
    %p101 = scmp.eq.s32.totalorder %s23, 0
    %p102 = por %p100, %p101
    %s104 = sadd.s32 %s103, 1
    %p107 = scmp.eq.s32.totalorder %s17, 1
    %p108 = scmp.ne.s32.totalorder %s103, %s105
    %p109 = scmp.eq.s32.totalorder %s17, 0
    %p110 = por %p108, %p109
    %p111 = scmp.ne.s32.totalorder %s103, %s105
    %p112 = scmp.eq.s32.totalorder %s22, 1
    %p113 = por %p111, %p112
    %p114 = scmp.ne.s32.totalorder %s105, %s106
    %p115 = scmp.eq.s32.totalorder %s22, 0
    %p116 = por %p114, %p115
    %p117 = scmp.ne.s32.totalorder %s105, %s106
    %p118 = scmp.eq.s32.totalorder %s23, 1
    %p119 = por %p117, %p118
    %p121 = scmp.ne.s32.totalorder %s106, %s120
    %p122 = scmp.eq.s32.totalorder %s23, 0
    %p123 = por %p121, %p122
    %s125 = sadd.s32 %s124, 1
    %p128 = scmp.eq.s32.totalorder %s17, 1
    %p129 = scmp.ne.s32.totalorder %s124, %s126
    %p130 = scmp.eq.s32.totalorder %s17, 0
    %p131 = por %p129, %p130
    %p132 = scmp.ne.s32.totalorder %s124, %s126
    %p133 = scmp.eq.s32.totalorder %s22, 1
    %p134 = por %p132, %p133
    %p135 = scmp.ne.s32.totalorder %s126, %s127
    %p136 = scmp.eq.s32.totalorder %s22, 0
    %p137 = por %p135, %p136
    %p138 = scmp.ne.s32.totalorder %s126, %s127
    %p139 = scmp.eq.s32.totalorder %s23, 1
    %p140 = por %p138, %p139
    %p142 = scmp.ne.s32.totalorder %s127, %s141
    %p143 = scmp.eq.s32.totalorder %s23, 0
    %p144 = por %p142, %p143
    %s146 = sadd.s32 %s145, 1
    %p149 = scmp.eq.s32.totalorder %s17, 1
    %p150 = scmp.ne.s32.totalorder %s145, %s147
    %p151 = scmp.eq.s32.totalorder %s17, 0
    %p152 = por %p150, %p151
    %p153 = scmp.ne.s32.totalorder %s145, %s147
    %p154 = scmp.eq.s32.totalorder %s22, 1
    %p155 = por %p153, %p154
    %p156 = scmp.ne.s32.totalorder %s147, %s148
    %p157 = scmp.eq.s32.totalorder %s22, 0
    %p158 = por %p156, %p157
    %p159 = scmp.ne.s32.totalorder %s147, %s148
    %p160 = scmp.eq.s32.totalorder %s23, 1
    %p161 = por %p159, %p160
    %p163 = scmp.ne.s32.totalorder %s148, %s162
    %p164 = scmp.eq.s32.totalorder %s23, 0
    %p165 = por %p163, %p164
    %s167 = sadd.s32 %s166, 1
    %p170 = scmp.eq.s32.totalorder %s17, 1
    %p171 = scmp.ne.s32.totalorder %s166, %s168
    %p172 = scmp.eq.s32.totalorder %s17, 0
    %p173 = por %p171, %p172
    %p174 = scmp.ne.s32.totalorder %s166, %s168
    %p175 = scmp.eq.s32.totalorder %s22, 1
    %p176 = por %p174, %p175
    %p177 = scmp.ne.s32.totalorder %s168, %s169
    %p178 = scmp.eq.s32.totalorder %s22, 0
    %p179 = por %p177, %p178
    %p180 = scmp.ne.s32.totalorder %s168, %s169
    %p181 = scmp.eq.s32.totalorder %s23, 1
    %p182 = por %p180, %p181
    %p184 = scmp.ne.s32.totalorder %s169, %s183
    %p185 = scmp.eq.s32.totalorder %s23, 0
    %p186 = por %p184, %p185
    %s188 = sadd.s32 %s187, 1
    %p191 = scmp.eq.s32.totalorder %s17, 1
    %p192 = scmp.ne.s32.totalorder %s187, %s189
    %p193 = scmp.eq.s32.totalorder %s17, 0
    %p194 = por %p192, %p193
    %p195 = scmp.ne.s32.totalorder %s187, %s189
    %p196 = scmp.eq.s32.totalorder %s22, 1
    %p197 = por %p195, %p196
    %p198 = scmp.ne.s32.totalorder %s189, %s190
    %p199 = scmp.eq.s32.totalorder %s22, 0
    %p200 = por %p198, %p199
    %p201 = scmp.ne.s32.totalorder %s189, %s190
    %p202 = scmp.eq.s32.totalorder %s23, 1
    %p203 = por %p201, %p202
    %p205 = scmp.ne.s32.totalorder %s190, %s204
    %p206 = scmp.eq.s32.totalorder %s23, 0
    %p207 = por %p205, %p206
    %s209 = sadd.s32 %s208, 1
    %p212 = scmp.eq.s32.totalorder %s17, 1
    %p213 = scmp.ne.s32.totalorder %s208, %s210
    %p214 = scmp.eq.s32.totalorder %s17, 0
    %p215 = por %p213, %p214
    %p216 = scmp.ne.s32.totalorder %s208, %s210
    %p217 = scmp.eq.s32.totalorder %s22, 1
    %p218 = por %p216, %p217
    %p219 = scmp.ne.s32.totalorder %s210, %s211
    %p220 = scmp.eq.s32.totalorder %s22, 0
    %p221 = por %p219, %p220
    %p222 = scmp.ne.s32.totalorder %s210, %s211
    %p223 = scmp.eq.s32.totalorder %s23, 1
    %p224 = por %p222, %p223
    %p226 = scmp.ne.s32.totalorder %s211, %s225
    %p227 = scmp.eq.s32.totalorder %s23, 0
    %p228 = por %p226, %p227
    %s230 = sadd.s32 %s229, 1
    %p233 = scmp.eq.s32.totalorder %s17, 1
    %p234 = scmp.ne.s32.totalorder %s229, %s231
    %p235 = scmp.eq.s32.totalorder %s17, 0
    %p236 = por %p234, %p235
    %p237 = scmp.ne.s32.totalorder %s229, %s231
    %p238 = scmp.eq.s32.totalorder %s22, 1
    %p239 = por %p237, %p238
    %p240 = scmp.ne.s32.totalorder %s231, %s232
    %p241 = scmp.eq.s32.totalorder %s22, 0
    %p242 = por %p240, %p241
    %p243 = scmp.ne.s32.totalorder %s231, %s232
    %p244 = scmp.eq.s32.totalorder %s23, 1
    %p245 = por %p243, %p244
    %p247 = scmp.ne.s32.totalorder %s232, %s246
    %p248 = scmp.eq.s32.totalorder %s23, 0
    %p249 = por %p247, %p248
    %s251 = sadd.s32 %s250, 1
    %p254 = scmp.eq.s32.totalorder %s17, 1
    %p255 = scmp.ne.s32.totalorder %s250, %s252
    %p256 = scmp.eq.s32.totalorder %s17, 0
    %p257 = por %p255, %p256
    %p258 = scmp.ne.s32.totalorder %s250, %s252
    %p259 = scmp.eq.s32.totalorder %s22, 1
    %p260 = por %p258, %p259
    %p261 = scmp.ne.s32.totalorder %s252, %s253
    %p262 = scmp.eq.s32.totalorder %s22, 0
    %p263 = por %p261, %p262
    %p264 = scmp.ne.s32.totalorder %s252, %s253
    %p265 = scmp.eq.s32.totalorder %s23, 1
    %p266 = por %p264, %p265
    %p268 = scmp.ne.s32.totalorder %s253, %s267
    %p269 = scmp.eq.s32.totalorder %s23, 0
    %p270 = por %p268, %p269
    %s271 = ssub.s32 %s17, %s24
    %p272 = scmp.eq.s32.totalorder %s271, 0
    %s274 = sadd.s32 %s273, 1
    %s275 = scalar_select %p272, %s273, %s274
    %p278 = pneg %p272
    %p279 = scmp.eq.s32.totalorder %s17, 1
    %p280 = por %p278, %p279
    %p281 = scmp.ne.s32.totalorder %s273, %s276
    %p282 = scmp.eq.s32.totalorder %s17, 0
    %p283 = por %p281, %p282
    %p284 = scmp.ne.s32.totalorder %s273, %s276
    %p285 = scmp.eq.s32.totalorder %s22, 1
    %p286 = por %p284, %p285
    %p287 = scmp.ne.s32.totalorder %s276, %s277
    %p288 = scmp.eq.s32.totalorder %s22, 0
    %p289 = por %p287, %p288
    %p290 = scmp.ne.s32.totalorder %s276, %s277
    %p291 = scmp.eq.s32.totalorder %s23, 1
    %p292 = por %p290, %p291
    %p294 = scmp.ne.s32.totalorder %s277, %s293
    %p295 = scmp.eq.s32.totalorder %s23, 0
    %p296 = por %p294, %p295
    %p297 = scmp.le.s32.totalorder 1, %s17
    %p298 = scmp.lt.s32.totalorder %s17, 3
    %p299 = pnand %p297, %p298
    %p300 = pneg %p299
    // Predicated region
    $region9: #{multi_head_attention.1} parent=5 // pred_check
      _
    $region10: #{multi_head_attention.1} parent=5 // pred_check_branch
      %302 = sbr.rel (%p299) target = $region12
    $region11: #{multi_head_attention.1} parent=5 // pred_region
      %s303 = ssub.s32 %s17, 1
      // Predicated region
      $region13: #{multi_head_attention.1} parent=11 // pred_check
        %p304 = pneg %p116
      $region14: #{multi_head_attention.1} parent=11 // pred_check_branch
        %306 = sbr.rel (%p304) target = $region16
      $region15: #{multi_head_attention.1} parent=11 // pred_region
        _
      $region16: #{multi_head_attention.1} parent=11 // pred_fallthru
        _
      // Predicated region
      $region17: #{multi_head_attention.1} parent=11 // pred_check
        %p307 = pneg %p137
      $region18: #{multi_head_attention.1} parent=11 // pred_check_branch
        %309 = sbr.rel (%p307) target = $region20
      $region19: #{multi_head_attention.1} parent=11 // pred_region
        _
      $region20: #{multi_head_attention.1} parent=11 // pred_fallthru
        _
      // Predicated region
      $region21: #{multi_head_attention.1} parent=11 // pred_check
        %p310 = pneg %p158
      $region22: #{multi_head_attention.1} parent=11 // pred_check_branch
        %312 = sbr.rel (%p310) target = $region24
      $region23: #{multi_head_attention.1} parent=11 // pred_region
        _
      $region24: #{multi_head_attention.1} parent=11 // pred_fallthru
        _
      // Predicated region
      $region25: #{multi_head_attention.1} parent=11 // pred_check
        %p313 = pneg %p179
      $region26: #{multi_head_attention.1} parent=11 // pred_check_branch
        %315 = sbr.rel (%p313) target = $region28
      $region27: #{multi_head_attention.1} parent=11 // pred_region
        _
      $region28: #{multi_head_attention.1} parent=11 // pred_fallthru
        _
      // Predicated region
      $region29: #{multi_head_attention.1} parent=11 // pred_check
        %p316 = pneg %p200
      $region30: #{multi_head_attention.1} parent=11 // pred_check_branch
        %318 = sbr.rel (%p316) target = $region32
      $region31: #{multi_head_attention.1} parent=11 // pred_region
        _
      $region32: #{multi_head_attention.1} parent=11 // pred_fallthru
        _
      // Predicated region
      $region33: #{multi_head_attention.1} parent=11 // pred_check
        %p319 = pneg %p221
      $region34: #{multi_head_attention.1} parent=11 // pred_check_branch
        %321 = sbr.rel (%p319) target = $region36
      $region35: #{multi_head_attention.1} parent=11 // pred_region
        _
      $region36: #{multi_head_attention.1} parent=11 // pred_fallthru
        _
      // Predicated region
      $region37: #{multi_head_attention.1} parent=11 // pred_check
        %p322 = pneg %p242
      $region38: #{multi_head_attention.1} parent=11 // pred_check_branch
        %324 = sbr.rel (%p322) target = $region40
      $region39: #{multi_head_attention.1} parent=11 // pred_region
        _
      $region40: #{multi_head_attention.1} parent=11 // pred_fallthru
        _
      // Predicated region
      $region41: #{multi_head_attention.1} parent=11 // pred_check
        %p325 = pneg %p263
      $region42: #{multi_head_attention.1} parent=11 // pred_check_branch
        %327 = sbr.rel (%p325) target = $region44
      $region43: #{multi_head_attention.1} parent=11 // pred_region
        _
      $region44: #{multi_head_attention.1} parent=11 // pred_fallthru
        _
    $region12: #{multi_head_attention.1} parent=5 // pred_fallthru
      _
    %p328 = scmp.lt.s32.totalorder %s17, 2
    // Predicated region
    $region45: #{multi_head_attention.1} parent=5 // pred_check
      %p329 = pneg %p328
    $region46: #{multi_head_attention.1} parent=5 // pred_check_branch
      %331 = sbr.rel (%p329) target = $region48
    $region47: #{multi_head_attention.1} parent=5 // pred_region
      // Predicated region
      $region49: #{multi_head_attention.1} parent=47 // pred_check
        %p332 = pneg %p37
      $region50: #{multi_head_attention.1} parent=47 // pred_check_branch
        %334 = sbr.rel (%p332) target = $region52
      $region51: #{multi_head_attention.1} parent=47 // pred_region
        %s335 = smul.u32 8, %s17
        %p336 = scmp.lt.s32.totalorder %s335, 15
        %s337 = scalar_select %p336, %s335, 15
        %s338 = smul.addr %s337, 8
        %s339 = scalar_lea.vmem %s0, %s338
        %s340 = smul.u32 8, %s17
      $region52: #{multi_head_attention.1} parent=47 // pred_fallthru
        _
      // Predicated region
      $region53: #{multi_head_attention.1} parent=47 // pred_check
        %p341 = pneg %p63
      $region54: #{multi_head_attention.1} parent=47 // pred_check_branch
        %343 = sbr.rel (%p341) target = $region56
      $region55: #{multi_head_attention.1} parent=47 // pred_region
        %s344 = smul.u32 8, %s17
        %p345 = scmp.lt.s32.totalorder %s344, 15
        %s346 = scalar_select %p345, %s344, 15
        %s347 = smul.addr %s346, 8
        %s348 = scalar_lea.vmem %s1, %s347
        %s349 = smul.u32 8, %s17
      $region56: #{multi_head_attention.1} parent=47 // pred_fallthru
        _
      // Predicated region
      $region57: #{multi_head_attention.1} parent=47 // pred_check
        %p350 = pneg %p89
      $region58: #{multi_head_attention.1} parent=47 // pred_check_branch
        %352 = sbr.rel (%p350) target = $region60
      $region59: #{multi_head_attention.1} parent=47 // pred_region
        %s353 = smul.u32 8, %s17
        %p354 = scmp.lt.s32.totalorder %s353, 15
        %s355 = scalar_select %p354, %s353, 15
        %s356 = smul.addr %s355, 8
        %s357 = scalar_lea.vmem %s2, %s356
        %s358 = smul.u32 8, %s17
      $region60: #{multi_head_attention.1} parent=47 // pred_fallthru
        _
    $region48: #{multi_head_attention.1} parent=5 // pred_fallthru
      _
    %p359 = scmp.le.s32.totalorder 1, %s17
    %p360 = scmp.lt.s32.totalorder %s17, 3
    %p361 = pnand %p359, %p360
    %p362 = pneg %p361
    // Predicated region
    $region61: #{multi_head_attention.1} parent=5 // pred_check
      _
    $region62: #{multi_head_attention.1} parent=5 // pred_check_branch
      %364 = sbr.rel (%p361) target = $region64
    $region63: #{multi_head_attention.1} parent=5 // pred_region
      %s365 = ssub.s32 %s17, 1
      %s366 = smul.u32 8, %s22
      %p367 = scmp.lt.s32.totalorder %s366, 15
      %s368 = scalar_select %p367, %s366, 15
      %s369 = smul.addr %s368, 8
      %s370 = scalar_lea.vmem %s0, %s369
      %p371 = pneg %p43
      %p372 = pneg %p40
      %s373 = smul.u32 8, %s22
      %p374 = scmp.lt.s32.totalorder %s373, 15
      %s375 = scalar_select %p374, %s373, 15
      %s376 = smul.addr %s375, 8
      %s377 = scalar_lea.vmem %s1, %s376
      %p378 = pneg %p69
      %p379 = pneg %p66
      %s380 = smul.u32 8, %s22
      %p381 = scmp.lt.s32.totalorder %s380, 15
      %s382 = scalar_select %p381, %s380, 15
      %s383 = smul.addr %s382, 8
      %s384 = scalar_lea.vmem %s2, %s383
      %p385 = pneg %p95
      %p386 = pneg %p92
      %p387 = pneg %p116
      %p388 = pneg %p113
      %p389 = pneg %p137
      %p390 = pneg %p134
      %p391 = pneg %p158
      %p392 = pneg %p155
      %p393 = pneg %p179
      %p394 = pneg %p176
      %p395 = pneg %p200
      %p396 = pneg %p197
      %p397 = pneg %p221
      %p398 = pneg %p218
      %p399 = pneg %p242
      %p400 = pneg %p239
      %p401 = pneg %p263
      %p402 = pneg %p260
      %p403 = pneg %p289
      %p404 = pneg %p286
      %s405 = smul.u32 8, %s22
      %p406 = scmp.lt.s32.totalorder %s405, 15
      %s407 = scalar_select %p406, %s405, 15
      %s408 = smul.addr %s407, 8
      %s409 = scalar_lea.vmem %s11, %s408
      %s410 = smul.u32 8, %s22
      %p411 = scmp.lt.s32.totalorder %s410, 15
      %s412 = scalar_select %p411, %s410, 15
      %s413 = smul.addr %s412, 8
      %s414 = scalar_lea.vmem %s0, %s413
      %s415 = smul.u32 8, %s22
      %s416 = smul.u32 8, %s22
      %p417 = scmp.lt.s32.totalorder %s416, 15
      %s418 = scalar_select %p417, %s416, 15
      %s419 = smul.addr %s418, 8
      %s420 = scalar_lea.vmem %s1, %s419
      %s421 = smul.u32 8, %s22
      %s422 = smul.u32 8, %s22
      %p423 = scmp.lt.s32.totalorder %s422, 15
      %s424 = scalar_select %p423, %s422, 15
      %s425 = smul.addr %s424, 8
      %s426 = scalar_lea.vmem %s2, %s425
      %s427 = smul.u32 8, %s22
      %s428 = smul.u32 8, %s22
      %p429 = scmp.lt.s32.totalorder %s428, 15
      %s430 = scalar_select %p429, %s428, 15
      %s431 = smul.addr %s430, 8
      %s432 = scalar_lea.vmem %s11, %s431
      %s433 = smul.u32 8, %s22
      loop: start=0, step=1, limit=16
      $region65: #{multi_head_attention.1} parent=63 // loop_pre_header
        _
      $region66: #{multi_head_attention.1} parent=63 // loop_header
        %s435 = sphi 0, %s439
        %p436 = scmp.ge.s32.totalorder %s435, 16
      $region67: #{multi_head_attention.1} parent=63 // loop_header_branch
        %438 = sbr.rel (%p436) target = $region71
      $region68: #{multi_head_attention.1} parent=63 // loop_body
        %s440 = smul.u32 %s435, 4
        %s441 = scalar_lea.vmem %s414, %s440
        %v442 = vld [vmem:[%s441] sm:$0xf]
        %s443 = scalar_lea.vmem %s420, %s440
        %v444 = vld [vmem:[%s443] sm:$0xf]
        %s445 = scalar_lea.vmem %s426, %s440
        %v446 = vld [vmem:[%s445] sm:$0xf]
        %v447 = vld [vmem:[%s3] sm:$0xff]
        %v448 = vld [vmem:[%s3 + $0x8] sm:$0xff]
        %v449 = vld [vmem:[%s3 + $0x10] sm:$0xff]
        %v450 = vld [vmem:[%s3 + $0x18] sm:$0xff]
        %v452 = vrot.slane %v442, 1
        %v453 = vrot.slane %v442, 2
        %v454 = vrot.slane %v442, 3
        %v455 = vperm.slane %v442, 0
        %v456 = vperm.slane %v452, 0
        %v457 = vperm.slane %v453, 0
        %v458 = vperm.slane %v454, 0
        %v463 = vmul.f32 %v447, %v455
        %v464 = vmul.f32 %v448, %v455
        %v465 = vmul.f32 %v449, %v455
        %v466 = vmul.f32 %v450, %v455
        %v467 = vmul.f32 %v447, %v456
        %v468 = vmul.f32 %v448, %v456
        %v469 = vmul.f32 %v449, %v456
        %v470 = vmul.f32 %v450, %v456
        %v471 = vmul.f32 %v447, %v457
        %v472 = vmul.f32 %v448, %v457
        %v473 = vmul.f32 %v449, %v457
        %v474 = vmul.f32 %v450, %v457
        %v475 = vmul.f32 %v447, %v458
        %v476 = vmul.f32 %v448, %v458
        %v477 = vmul.f32 %v449, %v458
        %v478 = vmul.f32 %v450, %v458
        %v479 = vld [vmem:[%s4] sm:$0xff]
        %v480 = vld [vmem:[%s4 + $0x8] sm:$0xff]
        %v481 = vld [vmem:[%s4 + $0x10] sm:$0xff]
        %v482 = vld [vmem:[%s4 + $0x18] sm:$0xff]
        %vm483 = vcmask 261120
        %v485 = vsel %vm483, %v463, 0
        %v488 = vsel %vm483, %v464, 0
        %v491 = vsel %vm483, %v465, 0
        %v494 = vsel %vm483, %v466, 0
        %v497 = vsel %vm483, %v467, 0
        %v500 = vsel %vm483, %v468, 0
        %v503 = vsel %vm483, %v469, 0
        %v506 = vsel %vm483, %v470, 0
        %v509 = vsel %vm483, %v471, 0
        %v512 = vsel %vm483, %v472, 0
        %v515 = vsel %vm483, %v473, 0
        %v518 = vsel %vm483, %v474, 0
        %v521 = vsel %vm483, %v475, 0
        %v524 = vsel %vm483, %v476, 0
        %v527 = vsel %vm483, %v477, 0
        %v530 = vsel %vm483, %v478, 0
        %532 = vmatpush.msra.mxu0 0.0
        %533 = vmatpush.msra.mxu0 0.0
        %534 = vmatpush.msra.mxu0 0.0
        %535 = vmatpush.msra.mxu0 0.0
        %536 = vmatpush.msra.mxu0 0.0
        %537 = vmatpush.msra.mxu0 0.0
        %538 = vmatpush.msra.mxu0 0.0
        %539 = vmatpush.msra.mxu0 0.0
        %540 = vmatpush.msra.mxu0 0.0
        %541 = vmatpush.msra.mxu0 0.0
        %542 = vmatpush.msra.mxu0 0.0
        %543 = vmatpush.msra.mxu0 0.0
        %544 = vmatpush.msra.mxu0 %v482
        %545 = vmatpush.msra.mxu0 %v481
        %546 = vmatpush.msra.mxu0 %v480
        %547 = vmatpush.msra.mxu0 %v479
        %548 = vmatmul.f32.gmra.mxu0 %v485
        %v549 = vpop.f32.mrf.mxu0
        %v550 = vadd.f32 0.0, %v549
        %551 = vmatmul.f32.gmra.mxu0 %v488
        %v552 = vpop.f32.mrf.mxu0
        %v553 = vadd.f32 0.0, %v552
        %554 = vmatmul.f32.gmra.mxu0 %v491
        %v555 = vpop.f32.mrf.mxu0
        %v556 = vadd.f32 0.0, %v555
        %557 = vmatmul.f32.gmra.mxu0 %v494
        %v558 = vpop.f32.mrf.mxu0
        %v559 = vadd.f32 0.0, %v558
        %560 = vmatmul.f32.gmra.mxu0 %v497
        %v561 = vpop.f32.mrf.mxu0
        %v562 = vadd.f32 0.0, %v561
        %563 = vmatmul.f32.gmra.mxu0 %v500
        %v564 = vpop.f32.mrf.mxu0
        %v565 = vadd.f32 0.0, %v564
        %566 = vmatmul.f32.gmra.mxu0 %v503
        %v567 = vpop.f32.mrf.mxu0
        %v568 = vadd.f32 0.0, %v567
        %569 = vmatmul.f32.gmra.mxu0 %v506
        %v570 = vpop.f32.mrf.mxu0
        %v571 = vadd.f32 0.0, %v570
        %572 = vmatmul.f32.gmra.mxu0 %v509
        %v573 = vpop.f32.mrf.mxu0
        %v574 = vadd.f32 0.0, %v573
        %575 = vmatmul.f32.gmra.mxu0 %v512
        %v576 = vpop.f32.mrf.mxu0
        %v577 = vadd.f32 0.0, %v576
        %578 = vmatmul.f32.gmra.mxu0 %v515
        %v579 = vpop.f32.mrf.mxu0
        %v580 = vadd.f32 0.0, %v579
        %581 = vmatmul.f32.gmra.mxu0 %v518
        %v582 = vpop.f32.mrf.mxu0
        %v583 = vadd.f32 0.0, %v582
        %584 = vmatmul.f32.gmra.mxu0 %v521
        %v585 = vpop.f32.mrf.mxu0
        %v586 = vadd.f32 0.0, %v585
        %587 = vmatmul.f32.gmra.mxu0 %v524
        %v588 = vpop.f32.mrf.mxu0
        %v589 = vadd.f32 0.0, %v588
        %590 = vmatmul.f32.gmra.mxu0 %v527
        %v591 = vpop.f32.mrf.mxu0
        %v592 = vadd.f32 0.0, %v591
        %593 = vmatmul.f32.gmra.mxu0 %v530
        %v594 = vpop.f32.mrf.mxu0
        %v595 = vadd.f32 0.0, %v594
        %596 = vdwg.mxu0
        %v598 = vrot.slane %v444, 1
        %v599 = vrot.slane %v444, 2
        %v600 = vrot.slane %v444, 3
        %v601 = vperm.slane %v444, 0
        %v602 = vperm.slane %v598, 0
        %v603 = vperm.slane %v599, 0
        %v604 = vperm.slane %v600, 0
        %v609 = vmul.f32 %v550, %v601
        %v610 = vmul.f32 %v553, %v601
        %v611 = vmul.f32 %v556, %v601
        %v612 = vmul.f32 %v559, %v601
        %v613 = vmul.f32 %v562, %v602
        %v614 = vmul.f32 %v565, %v602
        %v615 = vmul.f32 %v568, %v602
        %v616 = vmul.f32 %v571, %v602
        %v617 = vmul.f32 %v574, %v603
        %v618 = vmul.f32 %v577, %v603
        %v619 = vmul.f32 %v580, %v603
        %v620 = vmul.f32 %v583, %v603
        %v621 = vmul.f32 %v586, %v604
        %v622 = vmul.f32 %v589, %v604
        %v623 = vmul.f32 %v592, %v604
        %v624 = vmul.f32 %v595, %v604
        %v625 = vld [vmem:[%s5] sm:$0xff]
        %v626 = vld [vmem:[%s5 + $0x8] sm:$0xff]
        %v627 = vld [vmem:[%s5 + $0x10] sm:$0xff]
        %v628 = vld [vmem:[%s5 + $0x18] sm:$0xff]
        %v629 = vmul.f32 %v609, %v625
        %v630 = vmul.f32 %v610, %v626
        %v631 = vmul.f32 %v611, %v627
        %v632 = vmul.f32 %v612, %v628
        %v633 = vmul.f32 %v613, %v625
        %v634 = vmul.f32 %v614, %v626
        %v635 = vmul.f32 %v615, %v627
        %v636 = vmul.f32 %v616, %v628
        %v637 = vmul.f32 %v617, %v625
        %v638 = vmul.f32 %v618, %v626
        %v639 = vmul.f32 %v619, %v627
        %v640 = vmul.f32 %v620, %v628
        %v641 = vmul.f32 %v621, %v625
        %v642 = vmul.f32 %v622, %v626
        %v643 = vmul.f32 %v623, %v627
        %v644 = vmul.f32 %v624, %v628
        %v645 = vmax.f32 %v629, %v630
        %v646 = vmax.f32 %v645, %v631
        %v647 = vmax.f32 %v646, %v632
        %v648 = vrot.slane %v647, 4
        %v649 = vmax.f32 %v647, %v648
        %v650 = vrot.slane %v649, 2
        %v651 = vmax.f32 %v649, %v650
        %v652 = vrot.slane %v651, 1
        %v653 = vmax.f32 %v651, %v652
        %v654 = vmax.f32 %v633, %v634
        %v655 = vmax.f32 %v654, %v635
        %v656 = vmax.f32 %v655, %v636
        %v657 = vrot.slane %v656, 4
        %v658 = vmax.f32 %v656, %v657
        %v659 = vrot.slane %v658, 2
        %v660 = vmax.f32 %v658, %v659
        %v661 = vrot.slane %v660, 1
        %v662 = vmax.f32 %v660, %v661
        %v663 = vmax.f32 %v637, %v638
        %v664 = vmax.f32 %v663, %v639
        %v665 = vmax.f32 %v664, %v640
        %v666 = vrot.slane %v665, 4
        %v667 = vmax.f32 %v665, %v666
        %v668 = vrot.slane %v667, 2
        %v669 = vmax.f32 %v667, %v668
        %v670 = vrot.slane %v669, 1
        %v671 = vmax.f32 %v669, %v670
        %v672 = vmax.f32 %v641, %v642
        %v673 = vmax.f32 %v672, %v643
        %v674 = vmax.f32 %v673, %v644
        %v675 = vrot.slane %v674, 4
        %v676 = vmax.f32 %v674, %v675
        %v677 = vrot.slane %v676, 2
        %v678 = vmax.f32 %v676, %v677
        %v679 = vrot.slane %v678, 1
        %v680 = vmax.f32 %v678, %v679
        %v681 = vsub.f32 %v629, %v653
        %v682 = vsub.f32 %v630, %v653
        %v683 = vsub.f32 %v631, %v653
        %v684 = vsub.f32 %v632, %v653
        %v685 = vsub.f32 %v633, %v662
        %v686 = vsub.f32 %v634, %v662
        %v687 = vsub.f32 %v635, %v662
        %v688 = vsub.f32 %v636, %v662
        %v689 = vsub.f32 %v637, %v671
        %v690 = vsub.f32 %v638, %v671
        %v691 = vsub.f32 %v639, %v671
        %v692 = vsub.f32 %v640, %v671
        %v693 = vsub.f32 %v641, %v680
        %v694 = vsub.f32 %v642, %v680
        %v695 = vsub.f32 %v643, %v680
        %v696 = vsub.f32 %v644, %v680
        %v697 = vmul.f32 %v681, 1.442695
        %v698 = vpow.pop %v697
        %v699 = vmul.f32 %v682, 1.442695
        %v700 = vpow.pop %v699
        %v701 = vmul.f32 %v683, 1.442695
        %v702 = vpow.pop %v701
        %v703 = vmul.f32 %v684, 1.442695
        %v704 = vpow.pop %v703
        %v705 = vmul.f32 %v685, 1.442695
        %v706 = vpow.pop %v705
        %v707 = vmul.f32 %v686, 1.442695
        %v708 = vpow.pop %v707
        %v709 = vmul.f32 %v687, 1.442695
        %v710 = vpow.pop %v709
        %v711 = vmul.f32 %v688, 1.442695
        %v712 = vpow.pop %v711
        %v713 = vmul.f32 %v689, 1.442695
        %v714 = vpow.pop %v713
        %v715 = vmul.f32 %v690, 1.442695
        %v716 = vpow.pop %v715
        %v717 = vmul.f32 %v691, 1.442695
        %v718 = vpow.pop %v717
        %v719 = vmul.f32 %v692, 1.442695
        %v720 = vpow.pop %v719
        %v721 = vmul.f32 %v693, 1.442695
        %v722 = vpow.pop %v721
        %v723 = vmul.f32 %v694, 1.442695
        %v724 = vpow.pop %v723
        %v725 = vmul.f32 %v695, 1.442695
        %v726 = vpow.pop %v725
        %v727 = vmul.f32 %v696, 1.442695
        %v728 = vpow.pop %v727
        %v729 = vadd.f32 %v698, %v700
        %v730 = vadd.f32 %v729, %v702
        %v731 = vadd.f32 %v730, %v704
        %v732 = vrot.slane %v731, 4
        %v733 = vadd.f32 %v731, %v732
        %v734 = vrot.slane %v733, 2
        %v735 = vadd.f32 %v733, %v734
        %v736 = vrot.slane %v735, 1
        %v737 = vadd.f32 %v735, %v736
        %v738 = vadd.f32 %v706, %v708
        %v739 = vadd.f32 %v738, %v710
        %v740 = vadd.f32 %v739, %v712
        %v741 = vrot.slane %v740, 4
        %v742 = vadd.f32 %v740, %v741
        %v743 = vrot.slane %v742, 2
        %v744 = vadd.f32 %v742, %v743
        %v745 = vrot.slane %v744, 1
        %v746 = vadd.f32 %v744, %v745
        %v747 = vadd.f32 %v714, %v716
        %v748 = vadd.f32 %v747, %v718
        %v749 = vadd.f32 %v748, %v720
        %v750 = vrot.slane %v749, 4
        %v751 = vadd.f32 %v749, %v750
        %v752 = vrot.slane %v751, 2
        %v753 = vadd.f32 %v751, %v752
        %v754 = vrot.slane %v753, 1
        %v755 = vadd.f32 %v753, %v754
        %v756 = vadd.f32 %v722, %v724
        %v757 = vadd.f32 %v756, %v726
        %v758 = vadd.f32 %v757, %v728
        %v759 = vrot.slane %v758, 4
        %v760 = vadd.f32 %v758, %v759
        %v761 = vrot.slane %v760, 2
        %v762 = vadd.f32 %v760, %v761
        %v763 = vrot.slane %v762, 1
        %v764 = vadd.f32 %v762, %v763
        %v766 = vrot.slane %v446, 1
        %v767 = vrot.slane %v446, 2
        %v768 = vrot.slane %v446, 3
        %v772 = vrcp.pop %v737
        %v773 = vrcp.pop %v746
        %v774 = vrcp.pop %v755
        %v775 = vrcp.pop %v764
        %v776 = vmul.f32 %v446, %v772
        %v777 = vmul.f32 %v766, %v773
        %v778 = vmul.f32 %v767, %v774
        %v779 = vmul.f32 %v768, %v775
        %v784 = vperm.slane %v776, 0
        %v785 = vperm.slane %v777, 0
        %v786 = vperm.slane %v778, 0
        %v787 = vperm.slane %v779, 0
        %v792 = vmul.f32 %v698, %v784
        %v793 = vmul.f32 %v700, %v784
        %v794 = vmul.f32 %v702, %v784
        %v795 = vmul.f32 %v704, %v784
        %v796 = vmul.f32 %v706, %v785
        %v797 = vmul.f32 %v708, %v785
        %v798 = vmul.f32 %v710, %v785
        %v799 = vmul.f32 %v712, %v785
        %v800 = vmul.f32 %v714, %v786
        %v801 = vmul.f32 %v716, %v786
        %v802 = vmul.f32 %v718, %v786
        %v803 = vmul.f32 %v720, %v786
        %v804 = vmul.f32 %v722, %v787
        %v805 = vmul.f32 %v724, %v787
        %v806 = vmul.f32 %v726, %v787
        %v807 = vmul.f32 %v728, %v787
        %v808 = vld [vmem:[%s6] sm:$0xff]
        %v809 = vld [vmem:[%s6 + $0x8] sm:$0xff]
        %v810 = vld [vmem:[%s6 + $0x10] sm:$0xff]
        %v811 = vld [vmem:[%s6 + $0x18] sm:$0xff]
        %v812 = vmul.f32 %v792, %v808
        %v813 = vmul.f32 %v793, %v809
        %v814 = vmul.f32 %v794, %v810
        %v815 = vmul.f32 %v795, %v811
        %v816 = vmul.f32 %v796, %v808
        %v817 = vmul.f32 %v797, %v809
        %v818 = vmul.f32 %v798, %v810
        %v819 = vmul.f32 %v799, %v811
        %v820 = vmul.f32 %v800, %v808
        %v821 = vmul.f32 %v801, %v809
        %v822 = vmul.f32 %v802, %v810
        %v823 = vmul.f32 %v803, %v811
        %v824 = vmul.f32 %v804, %v808
        %v825 = vmul.f32 %v805, %v809
        %v826 = vmul.f32 %v806, %v810
        %v827 = vmul.f32 %v807, %v811
        %v828 = vld [vmem:[%s7] sm:$0xff]
        %v829 = vld [vmem:[%s7 + $0x8] sm:$0xff]
        %v830 = vld [vmem:[%s7 + $0x10] sm:$0xff]
        %v831 = vld [vmem:[%s7 + $0x18] sm:$0xff]
        %v832 = vld [vmem:[%s7 + $0x20] sm:$0xff]
        %v833 = vld [vmem:[%s7 + $0x28] sm:$0xff]
        %v834 = vld [vmem:[%s7 + $0x30] sm:$0xff]
        %v835 = vld [vmem:[%s7 + $0x38] sm:$0xff]
        %v836 = vld [vmem:[%s7 + $0x40] sm:$0xff]
        %v837 = vld [vmem:[%s7 + $0x48] sm:$0xff]
        %v838 = vld [vmem:[%s7 + $0x50] sm:$0xff]
        %v839 = vld [vmem:[%s7 + $0x58] sm:$0xff]
        %v840 = vld [vmem:[%s7 + $0x60] sm:$0xff]
        %v841 = vld [vmem:[%s7 + $0x68] sm:$0xff]
        %v842 = vld [vmem:[%s7 + $0x70] sm:$0xff]
        %v843 = vld [vmem:[%s7 + $0x78] sm:$0xff]
        %844 = vmatpush.msra.mxu0 %v843
        %845 = vmatpush.msra.mxu0 %v842
        %846 = vmatpush.msra.mxu0 %v841
        %847 = vmatpush.msra.mxu0 %v840
        %848 = vmatpush.msra.mxu0 %v839
        %849 = vmatpush.msra.mxu0 %v838
        %850 = vmatpush.msra.mxu0 %v837
        %851 = vmatpush.msra.mxu0 %v836
        %852 = vmatpush.msra.mxu0 %v835
        %853 = vmatpush.msra.mxu0 %v834
        %854 = vmatpush.msra.mxu0 %v833
        %855 = vmatpush.msra.mxu0 %v832
        %856 = vmatpush.msra.mxu0 %v831
        %857 = vmatpush.msra.mxu0 %v830
        %858 = vmatpush.msra.mxu0 %v829
        %859 = vmatpush.msra.mxu0 %v828
        %860 = vmatmul.f32.gmra.mxu0 %v812
        %v861 = vpop.f32.mrf.mxu0
        %v862 = vadd.f32 0.0, %v861
        %863 = vmatmul.f32.gmra.mxu0 %v813
        %v864 = vpop.f32.mrf.mxu0
        %v865 = vadd.f32 0.0, %v864
        %866 = vmatmul.f32.gmra.mxu0 %v814
        %v867 = vpop.f32.mrf.mxu0
        %v868 = vadd.f32 0.0, %v867
        %869 = vmatmul.f32.gmra.mxu0 %v815
        %v870 = vpop.f32.mrf.mxu0
        %v871 = vadd.f32 0.0, %v870
        %872 = vmatmul.f32.gmra.mxu0 %v816
        %v873 = vpop.f32.mrf.mxu0
        %v874 = vadd.f32 0.0, %v873
        %875 = vmatmul.f32.gmra.mxu0 %v817
        %v876 = vpop.f32.mrf.mxu0
        %v877 = vadd.f32 0.0, %v876
        %878 = vmatmul.f32.gmra.mxu0 %v818
        %v879 = vpop.f32.mrf.mxu0
        %v880 = vadd.f32 0.0, %v879
        %881 = vmatmul.f32.gmra.mxu0 %v819
        %v882 = vpop.f32.mrf.mxu0
        %v883 = vadd.f32 0.0, %v882
        %884 = vmatmul.f32.gmra.mxu0 %v820
        %v885 = vpop.f32.mrf.mxu0
        %v886 = vadd.f32 0.0, %v885
        %887 = vmatmul.f32.gmra.mxu0 %v821
        %v888 = vpop.f32.mrf.mxu0
        %v889 = vadd.f32 0.0, %v888
        %890 = vmatmul.f32.gmra.mxu0 %v822
        %v891 = vpop.f32.mrf.mxu0
        %v892 = vadd.f32 0.0, %v891
        %893 = vmatmul.f32.gmra.mxu0 %v823
        %v894 = vpop.f32.mrf.mxu0
        %v895 = vadd.f32 0.0, %v894
        %896 = vmatmul.f32.gmra.mxu0 %v824
        %v897 = vpop.f32.mrf.mxu0
        %v898 = vadd.f32 0.0, %v897
        %899 = vmatmul.f32.gmra.mxu0 %v825
        %v900 = vpop.f32.mrf.mxu0
        %v901 = vadd.f32 0.0, %v900
        %902 = vmatmul.f32.gmra.mxu0 %v826
        %v903 = vpop.f32.mrf.mxu0
        %v904 = vadd.f32 0.0, %v903
        %905 = vmatmul.f32.gmra.mxu0 %v827
        %v906 = vpop.f32.mrf.mxu0
        %v907 = vadd.f32 0.0, %v906
        %908 = vdwg.mxu0
        %v909 = vld [vmem:[%s8] sm:$0xff]
        %v910 = vld [vmem:[%s8 + $0x8] sm:$0xff]
        %v911 = vld [vmem:[%s8 + $0x10] sm:$0xff]
        %v912 = vld [vmem:[%s8 + $0x18] sm:$0xff]
        %v913 = vmul.f32 %v862, %v909
        %v914 = vmul.f32 %v865, %v910
        %v915 = vmul.f32 %v868, %v911
        %v916 = vmul.f32 %v871, %v912
        %v917 = vmul.f32 %v874, %v909
        %v918 = vmul.f32 %v877, %v910
        %v919 = vmul.f32 %v880, %v911
        %v920 = vmul.f32 %v883, %v912
        %v921 = vmul.f32 %v886, %v909
        %v922 = vmul.f32 %v889, %v910
        %v923 = vmul.f32 %v892, %v911
        %v924 = vmul.f32 %v895, %v912
        %v925 = vmul.f32 %v898, %v909
        %v926 = vmul.f32 %v901, %v910
        %v927 = vmul.f32 %v904, %v911
        %v928 = vmul.f32 %v907, %v912
        %v929 = vsel %vm483, %v913, 0.0
        %v930 = vsel %vm483, %v914, 0.0
        %v931 = vadd.f32 %v929, %v930
        %v932 = vsel %vm483, %v915, 0.0
        %v933 = vadd.f32 %v931, %v932
        %v934 = vsel %vm483, %v916, 0.0
        %v935 = vadd.f32 %v933, %v934
        %v936 = vrot.slane %v935, 4
        %v937 = vadd.f32 %v935, %v936
        %v938 = vrot.slane %v937, 2
        %v939 = vadd.f32 %v937, %v938
        %v940 = vrot.slane %v939, 1
        %v941 = vadd.f32 %v939, %v940
        %v942 = vsel %vm483, %v917, 0.0
        %v943 = vsel %vm483, %v918, 0.0
        %v944 = vadd.f32 %v942, %v943
        %v945 = vsel %vm483, %v919, 0.0
        %v946 = vadd.f32 %v944, %v945
        %v947 = vsel %vm483, %v920, 0.0
        %v948 = vadd.f32 %v946, %v947
        %v949 = vrot.slane %v948, 4
        %v950 = vadd.f32 %v948, %v949
        %v951 = vrot.slane %v950, 2
        %v952 = vadd.f32 %v950, %v951
        %v953 = vrot.slane %v952, 1
        %v954 = vadd.f32 %v952, %v953
        %v955 = vsel %vm483, %v921, 0.0
        %v956 = vsel %vm483, %v922, 0.0
        %v957 = vadd.f32 %v955, %v956
        %v958 = vsel %vm483, %v923, 0.0
        %v959 = vadd.f32 %v957, %v958
        %v960 = vsel %vm483, %v924, 0.0
        %v961 = vadd.f32 %v959, %v960
        %v962 = vrot.slane %v961, 4
        %v963 = vadd.f32 %v961, %v962
        %v964 = vrot.slane %v963, 2
        %v965 = vadd.f32 %v963, %v964
        %v966 = vrot.slane %v965, 1
        %v967 = vadd.f32 %v965, %v966
        %v968 = vsel %vm483, %v925, 0.0
        %v969 = vsel %vm483, %v926, 0.0
        %v970 = vadd.f32 %v968, %v969
        %v971 = vsel %vm483, %v927, 0.0
        %v972 = vadd.f32 %v970, %v971
        %v973 = vsel %vm483, %v928, 0.0
        %v974 = vadd.f32 %v972, %v973
        %v975 = vrot.slane %v974, 4
        %v976 = vadd.f32 %v974, %v975
        %v977 = vrot.slane %v976, 2
        %v978 = vadd.f32 %v976, %v977
        %v979 = vrot.slane %v978, 1
        %v980 = vadd.f32 %v978, %v979
        %vm985 = vcmask 1041409
        %v986 = vsel %vm985, %v954, %v941
        %vm987 = vcmask 1042434
        %v988 = vsel %vm987, %v967, %v986
        %vm989 = vcmask 1043459
        %v990 = vsel %vm989, %v980, %v988
        %v992 = vadd.f32 %v442, %v990
        %vm993 = vcmask 257024
        %v994 = vsel %vm993, %v992, 0.0
        %995 = vadd.xlane.f32.xlu0 %v994
        %v996 = vpop.xlane.xlu0 %995
        %v997 = vrcp.pop 32.0
        %v998 = vmul.f32 32.0, %v997
        %v999 = vsub.f32 1.0, %v998
        %v1000 = vmul.f32 %v997, %v999
        %v1001 = vadd.f32 %v997, %v1000
        %vm1002 = vweird.f32 %v997
        %v1003 = vsel %vm1002, %v997, %v1001
        %v1004 = vmul.f32 %v996, %v1003
        %v1005 = vsub.f32 %v992, %v1004
        %v1006 = vmul.f32 %v1005, %v1005
        %v1007 = vsel %vm993, %v1006, 0.0
        %1008 = vadd.xlane.f32.xlu0 %v1007
        %v1009 = vpop.xlane.xlu0 %1008
        %v1010 = vmul.f32 %v1009, %v1003
        %v1011 = vadd.f32 %v1010, 1e-05
        %v1012 = vrsqrt.pop %v1011
        %v1013 = vmul.f32 %v1012, %v1011
        %v1014 = vmul.f32 %v1013, %v1012
        %v1015 = vmul.f32 0.5, %v1014
        %v1016 = vsub.f32 1.5, %v1015
        %v1017 = vmul.f32 %v1012, %v1016
        %vm1018 = vweird.f32 %v1011
        %vm1019 = vweird.f32 %v1012
        %vm1020 = vmor %vm1018, %vm1019
        %v1021 = vsel %vm1020, %v1012, %v1017
        %v1022 = vmul.f32 %v1005, %v1021
        %v1023 = vld [vmem:[%s9] sm:$0x1]
        %v1025 = vperm.slane %v1023, 0
        %v1027 = vmul.f32 %v1022, %v1025
        %v1028 = vld [vmem:[%s10] sm:$0x1]
        %v1030 = vperm.slane %v1028, 0
        %v1032 = vadd.f32 %v1027, %v1030
        %s1033 = scalar_lea.vmem %s432, %s440
        %1034 = vst.msk [vmem:[%s1033] sm:$0xf] %vm993, %v1032
      $region69: #{multi_head_attention.1} parent=63 // loop_footer
        %s439 = sadd.s32 1, %s435
      $region70: #{multi_head_attention.1} parent=63 // loop_footer_branch
        %434 = sbr.rel target = $region66
      $region71: #{multi_head_attention.1} parent=63 // loop_exit
        _
      %s1035 = smul.u32 8, %s22
      %p1036 = scmp.lt.s32.totalorder %s1035, 15
      %s1037 = scalar_select %p1036, %s1035, 15
      %s1038 = smul.addr %s1037, 8
      %s1039 = scalar_lea.vmem %s11, %s1038
      // Predicated region
      $region72: #{multi_head_attention.1} parent=63 // pred_check
        %p1040 = pneg %p286
      $region73: #{multi_head_attention.1} parent=63 // pred_check_branch
        %1042 = sbr.rel (%p1040) target = $region75
      $region74: #{multi_head_attention.1} parent=63 // pred_region
        %s1043 = smul.u32 8, %s22
      $region75: #{multi_head_attention.1} parent=63 // pred_fallthru
        _
    $region64: #{multi_head_attention.1} parent=5 // pred_fallthru
      _
    %p1044 = scmp.le.s32.totalorder 2, %s17
    // Predicated region
    $region76: #{multi_head_attention.1} parent=5 // pred_check
      %p1045 = pneg %p1044
    $region77: #{multi_head_attention.1} parent=5 // pred_check_branch
      %1047 = sbr.rel (%p1045) target = $region79
    $region78: #{multi_head_attention.1} parent=5 // pred_region
      %s1048 = ssub.s32 %s17, 2
      // Predicated region
      $region80: #{multi_head_attention.1} parent=78 // pred_check
        %p1049 = pneg %p292
      $region81: #{multi_head_attention.1} parent=78 // pred_check_branch
        %1051 = sbr.rel (%p1049) target = $region83
      $region82: #{multi_head_attention.1} parent=78 // pred_region
        %s1052 = smul.u32 8, %s23
        %p1053 = scmp.lt.s32.totalorder %s1052, 15
        %s1054 = scalar_select %p1053, %s1052, 15
        %s1055 = smul.addr %s1054, 8
        %s1056 = scalar_lea.vmem %s11, %s1055
      $region83: #{multi_head_attention.1} parent=78 // pred_fallthru
        _
    $region79: #{multi_head_attention.1} parent=5 // pred_fallthru
      _
  $region6: #{multi_head_attention.1} parent=0 // loop_footer
    %s21 = sadd.s32 1, %s17
  $region7: #{multi_head_attention.1} parent=0 // loop_footer_branch
    %16 = sbr.rel target = $region3
  $region8: #{multi_head_attention.1} parent=0 // loop_exit
    _

</llo_original>
